<compile_context>
chip_gen: v6e
topology: v6e:2x2x1
jax: 0.10.0
libtpu: 0.0.40
codegen_flags: <defaults>
</compile_context>

<pallas_src>
import math
from typing import Optional, Sequence, Tuple, Union

import jax
import jax.numpy as jnp
from jax.experimental import pallas as pl
from jax.experimental.pallas import tpu as pltpu


def _round_up(x: int, m: int) -> int:
    return (x + m - 1) // m * m


def _cdiv(a: int, b: int) -> int:
    return -(-a // b)


# --------------------------------------------------------------------------
# Pallas kernels: softmax over the last (lane) axis of a (rows, norm) block.
# --------------------------------------------------------------------------
def _softmax_kernel(x_ref, o_ref):
    x = x_ref[...].astype(jnp.float32)
    m = jnp.max(x, axis=-1, keepdims=True)
    e = jnp.exp(x - m)
    s = jnp.sum(e, axis=-1, keepdims=True)
    inv = pl.reciprocal(s, approx=True)          # EUP, ~free vs per-elem div
    o_ref[...] = (e * inv).astype(o_ref.dtype)


def _masked_softmax_kernel(x_ref, lm_ref, o_ref):
    # lm_ref is a single (1, N) row broadcast over all rows of the block.
    x = x_ref[...].astype(jnp.float32) + lm_ref[...].astype(jnp.float32)
    m = jnp.max(x, axis=-1, keepdims=True)
    e = jnp.exp(x - m)
    s = jnp.sum(e, axis=-1, keepdims=True)
    inv = pl.reciprocal(s, approx=True)
    o_ref[...] = (e * inv).astype(o_ref.dtype)


# --------------------------------------------------------------------------
# Tiling policy.
# --------------------------------------------------------------------------
_PER_BUFFER_BYTES = 2 * 1024 * 1024   # ~2 MiB per pipeline buffer: with 2x(in)
                                      # + 2x(out) double-buffering this stays
                                      # under v5e's 16 MiB default scoped VMEM
                                      # and well under v7x's 64 MiB physical.


def _choose_block_r(R: int, N: int) -> int:
    lanes = _round_up(max(N, 1), 128)        # physical lane width in VMEM
    bytes_per_row = lanes * 4                # f32 compute width
    block_r = max(8, (_PER_BUFFER_BYTES // bytes_per_row) // 8 * 8)
    # Keep >= 2 row blocks whenever there is enough work so the "parallel"
    # grid axis can shard across both TensorCores on v7x (harmless on 1-TC
    # v5e / v6e; per-step overhead is ~0.35 us).
    if R >= 16:
        block_r = min(block_r, _round_up(_cdiv(R, 2), 8))
    if block_r >= R:
        return R                             # one full-slab block (any R legal)
    return block_r                           # multiple of 8; last block ragged


# --------------------------------------------------------------------------
# Wrapper: row-wise softmax of a 2-D array (softmax over the last axis).
# --------------------------------------------------------------------------
def pallas_softmax_2d(x: jnp.ndarray,
                      log_mask_row: Optional[jnp.ndarray] = None) -> jnp.ndarray:
    """Softmax over the last axis. `log_mask_row` is an optional (1, N) row
    added (with broadcast over rows) inside the kernel."""
    R, N = x.shape
    block_r = _choose_block_r(R, N)
    grid = (_cdiv(R, block_r),)

    in_specs = [pl.BlockSpec((block_r, N), lambda i: (i, 0))]
    args = [x]
    if log_mask_row is not None:
        assert log_mask_row.shape == (1, N)
        in_specs.append(pl.BlockSpec((1, N), lambda i: (0, 0)))
        args.append(log_mask_row)
        kernel = _masked_softmax_kernel
    else:
        kernel = _softmax_kernel

    # Explicit VMEM budget (double-buffered big input + output, tiny mask row).
    lanes = _round_up(N, 128)
    rp = _round_up(block_r, 8)
    est = (2 + 2) * rp * lanes * 4 + 2 * 8 * lanes * 4
    vmem_limit = int(min(max(2 * est, 16 * 2**20), 48 * 2**20))

    return pl.pallas_call(
        kernel,
        out_shape=jax.ShapeDtypeStruct((R, N), x.dtype),   # native dtype out
        grid=grid,
        in_specs=in_specs,
        out_specs=pl.BlockSpec((block_r, N), lambda i: (i, 0)),
        compiler_params=pltpu.CompilerParams(
            dimension_semantics=("parallel",),
            vmem_limit_bytes=vmem_limit),
    )(*args)


# --------------------------------------------------------------------------
# JAX port of the Reparameterization module (softmax reparam forward).
# --------------------------------------------------------------------------
class Reparameterization:
    """JAX/Pallas port of tenpcs' Reparameterization (softmax forward)."""

    def __init__(self,
                 size: Sequence[int],
                 *,
                 dim: Union[int, Sequence[int]],
                 mask: Optional[jnp.ndarray] = None,
                 log_mask: Optional[jnp.ndarray] = None,
                 key: jax.Array):
        self.shape: Tuple[int, ...] = tuple(size)
        nd = len(self.shape)
        if isinstance(dim, (tuple, list)):
            assert all(-nd <= d < nd for d in dim)
            self.dims = tuple(sorted(d if d >= 0 else d + nd for d in dim))
        else:
            assert -nd <= dim < nd
            self.dims = (dim if dim >= 0 else dim + nd,)

        assert mask is None or log_mask is None
        if mask is not None:
            jnp.broadcast_to(mask, self.shape)      # broadcastability check
            self.log_mask = jnp.log(mask.astype(jnp.float32))
        elif log_mask is not None:
            jnp.broadcast_to(log_mask, self.shape)  # broadcastability check
            self.log_mask = log_mask.astype(jnp.float32)
        else:
            self.log_mask = None

        # Deterministic raw parameter of shape `size`.
        self.param = jax.random.normal(key, self.shape, dtype=jnp.float32)

    @property
    def dtype(self):
        return jnp.float32

    def __call__(self) -> jnp.ndarray:
        nd = len(self.shape)
        dims = self.dims
        non_dims = tuple(d for d in range(nd) if d not in dims)
        # Single combined permutation (replaces flatten-permute + moveaxis):
        # non-normalized dims -> rows (sublanes), normalization dims -> lanes.
        perm = non_dims + dims
        R = int(math.prod(self.shape[d] for d in non_dims)) if non_dims else 1
        N = int(math.prod(self.shape[d] for d in dims))

        x = self.param
        lm_row = None
        if self.log_mask is not None:
            lm = self.log_mask
            lm = lm.reshape((1,) * (nd - lm.ndim) + lm.shape)  # right-align
            if all(lm.shape[d] == 1 for d in non_dims):
                # Row-invariant mask (the common case): ship one (1, N) row to
                # the kernel; no full-size mask broadcast hits HBM.
                full_dims_shape = tuple(
                    self.shape[d] if d in dims else 1 for d in range(nd))
                lm_row = jnp.transpose(
                    jnp.broadcast_to(lm, full_dims_shape), perm).reshape(1, N)
            else:
                # Mask varies along non-normalized dims: fold into the param
                # (XLA fuses this add into the transpose copy below).
                x = x + jnp.broadcast_to(lm, self.shape)

        # TODO(synk): for non-contiguous `dims` this transpose (and its
        # inverse) is a real HBM copy; folding the permutation into the kernel
        # via a multi-D grid/BlockSpec index_map would remove it.  For trailing
        # contiguous `dims` it is a no-op reshape.
        x2 = jnp.transpose(x, perm).reshape(R, N)
        y2 = pallas_softmax_2d(x2, lm_row)

        inv_perm = tuple(perm.index(d) for d in range(nd))
        y = y2.reshape(tuple(self.shape[d] for d in perm))
        return jnp.transpose(y, inv_perm)


# --------------------------------------------------------------------------
# Pure-JAX reference for validation.
# --------------------------------------------------------------------------
def ref_forward(param, log_mask, dims):
    x = param.astype(jnp.float32)
    if log_mask is not None:
        x = x + jnp.broadcast_to(log_mask, param.shape)
    x = x - jnp.max(x, axis=dims, keepdims=True)
    e = jnp.exp(x)
    return e / jnp.sum(e, axis=dims, keepdims=True)


if __name__ == "__main__":
    key = jax.random.PRNGKey(0)
    k1, k2, k3, k_mask = jax.random.split(key, 4)

    # (fold, arity, units_out, units_in)-style shape; normalize over arity x units_in.
    size = (4, 8, 16, 32)
    dims = (1, 3)

    # 1) Unmasked reparam.
    rep = Reparameterization(size, dim=dims, key=k1)
    out = jax.block_until_ready(rep())
    ref = ref_forward(rep.param, None, dims)
    assert out.shape == size
    assert jnp.allclose(out, ref, atol=1e-4, rtol=3e-3), "unmasked mismatch"
    assert jnp.allclose(jnp.sum(out, axis=dims), 1.0, atol=5e-3)

    # 2) Masked reparam (0/1 mask broadcastable to `size`, row-invariant after
    #    flattening; >= 1 active position per normalization group).
    mask = (jax.random.uniform(k_mask, (1, 8, 1, 32)) > 0.3).astype(jnp.float32)
    mask = mask.at[:, 0, :, 0].set(1.0)
    rep_m = Reparameterization(size, dim=dims, mask=mask, key=k2)
    out_m = jax.block_until_ready(rep_m())
    ref_m = ref_forward(rep_m.param, jnp.log(mask), dims)
    assert jnp.allclose(out_m, ref_m, atol=1e-4, rtol=3e-3), "masked mismatch"

    # 3) Non-aligned shapes: R not a multiple of the row tile (ragged last
    #    block), N not a multiple of 128, negative dim, trailing-dim fast path.
    size3 = (4, 5, 200)
    rep3 = Reparameterization(size3, dim=-1, key=k3)
    out3 = jax.block_until_ready(rep3())
    ref3 = ref_forward(rep3.param, None, (2,))
    assert out3.shape == size3
    assert jnp.allclose(out3, ref3, atol=1e-4, rtol=3e-3), "ragged mismatch"
    assert jnp.allclose(jnp.sum(out3, axis=-1), 1.0, atol=5e-3)

    print("KERNEL_OK")
</pallas_src>

<mosaic_0001>
module attributes {stable_mosaic.version = 11 : i64} {
  func.func @_softmax_kernel(%arg0: i32, %arg1: memref<32x256xf32, #tpu.memory_space<vmem>>, %arg2: memref<32x256xf32, #tpu.memory_space<vmem>>) attributes {dimension_semantics = [#tpu.dimension_semantics<parallel>], iteration_bounds = array<i64: 2>, scalar_prefetch = 0 : i64, scratch_operands = 0 : i64, tpu.core_type = #tpu.core_type<tc>, window_params = [{transform_indices = @transform_0, window_bounds = array<i64: 32, 256>}, {transform_indices = @transform_1, window_bounds = array<i64: 32, 256>}]} {
    %c0 = arith.constant 0 : index
    %c0_0 = arith.constant 0 : index
    %0 = vector.load %arg1[%c0, %c0_0] : memref<32x256xf32, #tpu.memory_space<vmem>>, vector<32x256xf32>
    %cst = arith.constant dense<0xFF800000> : vector<32xf32>
    %1 = vector.multi_reduction <maximumf>, %0, %cst [1] : vector<32x256xf32> to vector<32xf32>
    %2 = vector.shape_cast %1 : vector<32xf32> to vector<32x1xf32>
    %3 = vector.broadcast %2 : vector<32x1xf32> to vector<32x256xf32>
    %4 = arith.subf %0, %3 : vector<32x256xf32>
    %5 = math.exp %4 : vector<32x256xf32>
    %cst_1 = arith.constant dense<0.000000e+00> : vector<32xf32>
    %6 = vector.multi_reduction <add>, %5, %cst_1 [1] : vector<32x256xf32> to vector<32xf32>
    %7 = vector.shape_cast %6 : vector<32xf32> to vector<32x1xf32>
    %8 = tpu.reciprocal %7 {approx = true} : vector<32x1xf32> -> vector<32x1xf32>
    %9 = vector.broadcast %8 : vector<32x1xf32> to vector<32x256xf32>
    %10 = arith.mulf %5, %9 : vector<32x256xf32>
    %c0_2 = arith.constant 0 : index
    %c0_3 = arith.constant 0 : index
    %11 = vector.load %arg2[%c0_2, %c0_3] : memref<32x256xf32, #tpu.memory_space<vmem>>, vector<32x256xf32>
    tpu.vector_store %arg2[%c0_2, %c0_3], %10 {strides = array<i32>} : memref<32x256xf32, #tpu.memory_space<vmem>>, vector<32x256xf32>,
    return
  }
  func.func @transform_0(%arg0: i32) -> (i32, i32) {
    %c0_i32 = arith.constant 0 : i32
    %c0_i32_0 = arith.constant 0 : i32
    return %arg0, %c0_i32 : i32, i32
  }
  func.func @transform_1(%arg0: i32) -> (i32, i32) {
    %c0_i32 = arith.constant 0 : i32
    %c0_i32_0 = arith.constant 0 : i32
    return %arg0, %c0_i32 : i32, i32
  }
}

</mosaic_0001>

<llo_original>
// kernel: tpu_custom_call.1
$region0: #{tpu_custom_call.1}
  #allocation0 [shape = 'u32[]', space=smem, size = 0x4, offset = 0x4, fixed_abs, tag = 'smem constant byte address 0x4 - core index']
  #allocation1 [shape = 'u32[144,128]{1,0:T(1,128)}', space=vmem, size = 0x12000, scoped, tag = 'internal scratch']
  %s0 = inlined_call_operand.hbm [shape: f32[64,256], index: 0, kind: input, shape index: {}]
  %s1 = inlined_call_operand.hbm [shape: f32[64,256], index: 1, kind: output, shape index: {}]
  %s2 = sld [smem:[#allocation0]]
  $region41: #{tpu_custom_call.1} parent=0
    _
  %s4 = ssub.s32 1, %s2
  %s5 = scalar_select 0, %s4, %s2
  $region1: #{tpu_custom_call.1} parent=0
    #allocation2 [shape = 'u8[65536]{0}', space=vmem, size = 0x10000, scoped, tag = 'input window, operand 0']
    #allocation3 [shape = 's32[2]{0}', space=sflag, size = 0x8, scoped, tag = 'scoped memory for tpu_custom_call.1']
    #allocation4 [shape = 's32[2]{0}', space=sflag, size = 0x8, scoped, tag = 'scoped memory for tpu_custom_call.1']
    #allocation5 [shape = 'u8[65536]{0}', space=vmem, size = 0x10000, scoped, tag = 'output window, operand 0']
    %6 = vsyncpa [#allocation3], 0
    %s7 = scalar_lea.sflag [#allocation3], 1
    %8 = vsyncpa %s7, 0
    %9 = vsyncpa [#allocation4], 0
    %s10 = scalar_lea.sflag [#allocation4], 1
    %11 = vsyncpa %s10, 0
    loop: start=0, step=1, limit=4
    $region2: #{tpu_custom_call.1} parent=1 // loop_pre_header
      _
    $region3: #{tpu_custom_call.1} parent=1 // loop_header
      %s13 = sphi 0, %s17
      %p14 = scmp.ge.s32.totalorder %s13, 4
      %s23 = sphi 0, %s25
      %s26 = sphi 0, %s23
      %s27 = sphi 0, %s26
      %s43 = sphi 0, %s27
      %s49 = sphi 0, %s51
      %s52 = sphi 0, %s49
      %s53 = sphi 0, %s52
      %s69 = sphi 0, %s53
    $region4: #{tpu_custom_call.1} parent=1 // loop_header_branch
      %16 = sbr.rel (%p14) target = $region8
    $region5: #{tpu_custom_call.1} parent=1 // loop_body
      %s18 = ssub.s32 %s13, 1
      %s19 = ssub.s32 %s13, 2
      %s20 = sadd.s32 %s13, 1
      %s21 = ssub.s32 %s13, %s20
      %p22 = scmp.eq.s32.totalorder %s21, 0
      %s24 = sadd.s32 %s23, 1
      %s25 = scalar_select %p22, %s23, %s24
      %p28 = pneg %p22
      %p29 = scmp.eq.s32.totalorder %s13, 1
      %p30 = por %p28, %p29
      %p31 = scmp.ne.s32.totalorder %s23, %s26
      %p32 = scmp.eq.s32.totalorder %s13, 0
      %p33 = por %p31, %p32
      %p34 = scmp.ne.s32.totalorder %s23, %s26
      %p35 = scmp.eq.s32.totalorder %s18, 1
      %p36 = por %p34, %p35
      %p37 = scmp.ne.s32.totalorder %s26, %s27
      %p38 = scmp.eq.s32.totalorder %s18, 0
      %p39 = por %p37, %p38
      %p40 = scmp.ne.s32.totalorder %s26, %s27
      %p41 = scmp.eq.s32.totalorder %s19, 1
      %p42 = por %p40, %p41
      %p44 = scmp.ne.s32.totalorder %s27, %s43
      %p45 = scmp.eq.s32.totalorder %s19, 0
      %p46 = por %p44, %p45
      %s47 = ssub.s32 %s13, %s20
      %p48 = scmp.eq.s32.totalorder %s47, 0
      %s50 = sadd.s32 %s49, 1
      %s51 = scalar_select %p48, %s49, %s50
      %p54 = pneg %p48
      %p55 = scmp.eq.s32.totalorder %s13, 1
      %p56 = por %p54, %p55
      %p57 = scmp.ne.s32.totalorder %s49, %s52
      %p58 = scmp.eq.s32.totalorder %s13, 0
      %p59 = por %p57, %p58
      %p60 = scmp.ne.s32.totalorder %s49, %s52
      %p61 = scmp.eq.s32.totalorder %s18, 1
      %p62 = por %p60, %p61
      %p63 = scmp.ne.s32.totalorder %s52, %s53
      %p64 = scmp.eq.s32.totalorder %s18, 0
      %p65 = por %p63, %p64
      %p66 = scmp.ne.s32.totalorder %s52, %s53
      %p67 = scmp.eq.s32.totalorder %s19, 1
      %p68 = por %p66, %p67
      %p70 = scmp.ne.s32.totalorder %s53, %s69
      %p71 = scmp.eq.s32.totalorder %s19, 0
      %p72 = por %p70, %p71
      %p73 = scmp.le.s32.totalorder 1, %s13
      %p74 = scmp.lt.s32.totalorder %s13, 3
      %p75 = pnand %p73, %p74
      %p76 = pneg %p75
      // Predicated region
      $region9: #{tpu_custom_call.1} parent=5 // pred_check
        _
      $region10: #{tpu_custom_call.1} parent=5 // pred_check_branch
        %78 = sbr.rel (%p75) target = $region12
      $region11: #{tpu_custom_call.1} parent=5 // pred_region
        %s79 = ssub.s32 %s13, 1
      $region12: #{tpu_custom_call.1} parent=5 // pred_fallthru
        _
      %p80 = scmp.lt.s32.totalorder %s13, 2
      // Predicated region
      $region13: #{tpu_custom_call.1} parent=5 // pred_check
        %p81 = pneg %p80
      $region14: #{tpu_custom_call.1} parent=5 // pred_check_branch
        %83 = sbr.rel (%p81) target = $region16
      $region15: #{tpu_custom_call.1} parent=5 // pred_region
        // Predicated region
        $region17: #{tpu_custom_call.1} parent=15 // pred_check
          %p84 = pneg %p33
        $region18: #{tpu_custom_call.1} parent=15 // pred_check_branch
          %86 = sbr.rel (%p84) target = $region20
        $region19: #{tpu_custom_call.1} parent=15 // pred_region
          %s87 = sand.u32 %s23, 1
          %s88 = scalar_lea.sflag [#allocation3], %s87
          %s89 = sand.u32 %s23, 1
          %s90 = smul.addr %s89, 64
          %s91 = scalar_lea.vmem [#allocation2], %s90
          %s92 = smul.u32 4, %s13
          %s94 = ssub.s32 1024, 1024
          %95 = vsyncadd %s88, %s94
          %s96 = smul.addr %s92, 2
          %s97 = smul.addr %s96, 128
          %s98 = scalar_lea.hbm %s0, %s97
          %s99 = sshll.u32 %s91, 4
          %s100 = int_to_ptr.vmem [resolvable:$true] %s99
          %105 = dma.hbm_to_vmem [thread:$0]  %s98, 1024, %s100, %s88, 256, 256, 16
        $region20: #{tpu_custom_call.1} parent=15 // pred_fallthru
          _
      $region16: #{tpu_custom_call.1} parent=5 // pred_fallthru
        _
      %p106 = scmp.le.s32.totalorder 1, %s13
      %p107 = scmp.lt.s32.totalorder %s13, 3
      %p108 = pnand %p106, %p107
      %p109 = pneg %p108
      // Predicated region
      $region21: #{tpu_custom_call.1} parent=5 // pred_check
        _
      $region22: #{tpu_custom_call.1} parent=5 // pred_check_branch
        %111 = sbr.rel (%p108) target = $region24
      $region23: #{tpu_custom_call.1} parent=5 // pred_region
        %s112 = ssub.s32 %s13, 1
        %s113 = sand.u32 %s26, 1
        %s114 = scalar_lea.sflag [#allocation3], %s113
        %s115 = sand.u32 %s26, 1
        %s116 = smul.addr %s115, 64
        %s117 = scalar_lea.vmem [#allocation2], %s116
        // Predicated region
        $region25: #{tpu_custom_call.1} parent=23 // pred_check
          %p118 = pneg %p39
        $region26: #{tpu_custom_call.1} parent=23 // pred_check_branch
          %120 = sbr.rel (%p118) target = $region28
        $region27: #{tpu_custom_call.1} parent=23 // pred_region
          %121 = dma.done %s114, 1024
        $region28: #{tpu_custom_call.1} parent=23 // pred_fallthru
          _
        %s122 = sand.u32 %s26, 1
        %s123 = scalar_lea.sflag [#allocation3], %s122
        %s124 = sand.u32 %s26, 1
        %s125 = smul.addr %s124, 64
        %s126 = scalar_lea.vmem [#allocation2], %s125
        %p127 = pneg %p39
        %p128 = pneg %p36
        %p129 = pneg %p65
        %p130 = pneg %p62
        %s131 = sand.u32 %s52, 1
        %s132 = scalar_lea.sflag [#allocation4], %s131
        %s133 = sand.u32 %s52, 1
        %s134 = smul.addr %s133, 64
        %s135 = scalar_lea.vmem [#allocation5], %s134
        %s136 = smul.u32 4, %s18
        %s137 = smul.u32 4, %s18
        %v138 = vld [vmem:[%s117] sm:$0xff]
        %v139 = vld [vmem:[%s117 + $0x8] sm:$0xff]
        %v140 = vld [vmem:[%s117 + $0x10] sm:$0xff]
        %v141 = vld [vmem:[%s117 + $0x18] sm:$0xff]
        %v142 = vld [vmem:[%s117 + $0x20] sm:$0xff]
        %v143 = vld [vmem:[%s117 + $0x28] sm:$0xff]
        %v144 = vld [vmem:[%s117 + $0x30] sm:$0xff]
        %v145 = vld [vmem:[%s117 + $0x38] sm:$0xff]
        %v146 = vmax.f32 %v138, %v139
        %147 = vmax.xlane.f32.xlu0 %v146
        %v148 = vpop.xlane.xlu0 %147
        %v149 = vmax.f32 %v140, %v141
        %150 = vmax.xlane.f32.xlu0 %v149
        %v151 = vpop.xlane.xlu0 %150
        %v152 = vmax.f32 %v142, %v143
        %153 = vmax.xlane.f32.xlu0 %v152
        %v154 = vpop.xlane.xlu0 %153
        %v155 = vmax.f32 %v144, %v145
        %156 = vmax.xlane.f32.xlu0 %v155
        %v157 = vpop.xlane.xlu0 %156
        %v158 = vsub.f32 %v138, %v148
        %v159 = vsub.f32 %v139, %v148
        %v160 = vsub.f32 %v140, %v151
        %v161 = vsub.f32 %v141, %v151
        %v162 = vsub.f32 %v142, %v154
        %v163 = vsub.f32 %v143, %v154
        %v164 = vsub.f32 %v144, %v157
        %v165 = vsub.f32 %v145, %v157
        %v166 = vmul.f32 %v158, 1.442695
        %v167 = vpow.pop %v166
        %v168 = vmul.f32 %v159, 1.442695
        %v169 = vpow.pop %v168
        %v170 = vmul.f32 %v160, 1.442695
        %v171 = vpow.pop %v170
        %v172 = vmul.f32 %v161, 1.442695
        %v173 = vpow.pop %v172
        %v174 = vmul.f32 %v162, 1.442695
        %v175 = vpow.pop %v174
        %v176 = vmul.f32 %v163, 1.442695
        %v177 = vpow.pop %v176
        %v178 = vmul.f32 %v164, 1.442695
        %v179 = vpow.pop %v178
        %v180 = vmul.f32 %v165, 1.442695
        %v181 = vpow.pop %v180
        %v182 = vadd.f32 %v167, %v169
        %183 = vadd.xlane.f32.xlu0 %v182
        %v184 = vpop.xlane.xlu0 %183
        %v185 = vadd.f32 %v171, %v173
        %186 = vadd.xlane.f32.xlu0 %v185
        %v187 = vpop.xlane.xlu0 %186
        %v188 = vadd.f32 %v175, %v177
        %189 = vadd.xlane.f32.xlu0 %v188
        %v190 = vpop.xlane.xlu0 %189
        %v191 = vadd.f32 %v179, %v181
        %192 = vadd.xlane.f32.xlu0 %v191
        %v193 = vpop.xlane.xlu0 %192
        %v194 = vrcp.pop %v184
        %v195 = vrcp.pop %v187
        %v196 = vrcp.pop %v190
        %v197 = vrcp.pop %v193
        %v198 = vmul.f32 %v167, %v194
        %v199 = vmul.f32 %v169, %v194
        %v200 = vmul.f32 %v171, %v195
        %v201 = vmul.f32 %v173, %v195
        %v202 = vmul.f32 %v175, %v196
        %v203 = vmul.f32 %v177, %v196
        %v204 = vmul.f32 %v179, %v197
        %v205 = vmul.f32 %v181, %v197
        %206 = vst [vmem:[%s135] sm:$0xff] %v198
        %207 = vst [vmem:[%s135 + $0x8] sm:$0xff] %v199
        %208 = vst [vmem:[%s135 + $0x10] sm:$0xff] %v200
        %209 = vst [vmem:[%s135 + $0x18] sm:$0xff] %v201
        %210 = vst [vmem:[%s135 + $0x20] sm:$0xff] %v202
        %211 = vst [vmem:[%s135 + $0x28] sm:$0xff] %v203
        %212 = vst [vmem:[%s135 + $0x30] sm:$0xff] %v204
        %213 = vst [vmem:[%s135 + $0x38] sm:$0xff] %v205
        %s214 = sand.u32 %s52, 1
        %s215 = scalar_lea.sflag [#allocation4], %s214
        %s216 = sand.u32 %s52, 1
        %s217 = smul.addr %s216, 64
        %s218 = scalar_lea.vmem [#allocation5], %s217
        // Predicated region
        $region29: #{tpu_custom_call.1} parent=23 // pred_check
          %p219 = pneg %p62
        $region30: #{tpu_custom_call.1} parent=23 // pred_check_branch
          %221 = sbr.rel (%p219) target = $region32
        $region31: #{tpu_custom_call.1} parent=23 // pred_region
          %s222 = smul.u32 4, %s18
          %s224 = ssub.s32 1024, 1024
          %225 = vsyncadd %s215, %s224
          %s226 = smul.addr %s222, 2
          %s227 = smul.addr %s226, 128
          %s228 = scalar_lea.hbm %s1, %s227
          %s229 = sshll.u32 %s218, 4
          %s230 = int_to_ptr.vmem [resolvable:$true] %s229
          %235 = dma.vmem_to_hbm [thread:$0]  %s230, 1024, %s228, %s215, 256, 256, 16
        $region32: #{tpu_custom_call.1} parent=23 // pred_fallthru
          _
      $region24: #{tpu_custom_call.1} parent=5 // pred_fallthru
        _
      %p236 = scmp.le.s32.totalorder 2, %s13
      // Predicated region
      $region33: #{tpu_custom_call.1} parent=5 // pred_check
        %p237 = pneg %p236
      $region34: #{tpu_custom_call.1} parent=5 // pred_check_branch
        %239 = sbr.rel (%p237) target = $region36
      $region35: #{tpu_custom_call.1} parent=5 // pred_region
        %s240 = ssub.s32 %s13, 2
        // Predicated region
        $region37: #{tpu_custom_call.1} parent=35 // pred_check
          %p241 = pneg %p68
        $region38: #{tpu_custom_call.1} parent=35 // pred_check_branch
          %243 = sbr.rel (%p241) target = $region40
        $region39: #{tpu_custom_call.1} parent=35 // pred_region
          %s244 = sand.u32 %s53, 1
          %s245 = scalar_lea.sflag [#allocation4], %s244
          %s246 = sand.u32 %s53, 1
          %s247 = smul.addr %s246, 64
          %s248 = scalar_lea.vmem [#allocation5], %s247
          %249 = dma.done %s245, 1024
        $region40: #{tpu_custom_call.1} parent=35 // pred_fallthru
          _
      $region36: #{tpu_custom_call.1} parent=5 // pred_fallthru
        _
    $region6: #{tpu_custom_call.1} parent=1 // loop_footer
      %s17 = sadd.s32 1, %s13
    $region7: #{tpu_custom_call.1} parent=1 // loop_footer_branch
      %12 = sbr.rel target = $region3
    $region8: #{tpu_custom_call.1} parent=1 // loop_exit
      _
    %250 = vsyncpa [#allocation3], 1
    %s251 = scalar_lea.sflag [#allocation3], 1
    %252 = vsyncpa %s251, 1
    %253 = vsyncpa [#allocation4], 1
    %s254 = scalar_lea.sflag [#allocation4], 1
    %255 = vsyncpa %s254, 1

</llo_original>
